<compile_context>
chip_gen: v6e
topology: v6e:2x2x1
jax: 0.10.0
libtpu: 0.0.40
codegen_flags: <defaults>
</compile_context>

<pallas_src>
import functools

import jax
import jax.numpy as jnp
from jax.experimental import pallas as pl
from jax.experimental.pallas import tpu as pltpu

_VMEM_LIMIT_BYTES = 48 * 1024 * 1024   # > every gen's scoped default, < v7x's 64 MiB physical
_VMEM_TILE_BUDGET = 24 * 1024 * 1024   # budget for the batch-tile buffers when capping tile_b


def _cdiv(a: int, b: int) -> int:
    return -(-a // b)


def _round_up(n: int, m: int) -> int:
    return _cdiv(n, m) * m


def _mlp_decoder_kernel(x_ref, w1_ref, b1_ref, w2_ref, b2_ref, o_ref):
    """Fused (Linear -> ReLU) -> (Linear -> ReLU) on one batch tile."""
    # Layer 0: cast x to bf16 in-kernel (avoids a wrapper-side HBM convert),
    # bf16 x bf16 matmul with f32 accumulation, f32 bias add, ReLU.
    x = x_ref[...].astype(w1_ref.dtype)
    h = jnp.dot(x, w1_ref[...], preferred_element_type=jnp.float32) + b1_ref[...]
    h = jnp.maximum(h, 0.0)
    # Layer 1: keep h in f32 for the second matmul (PyTorch-parity; the MXU
    # has huge slack since the kernel is HBM-bound). The w2 upcast is a tiny
    # resident tile.
    o = jnp.dot(h, w2_ref[...].astype(jnp.float32),
                preferred_element_type=jnp.float32) + b2_ref[...]
    o = jnp.maximum(o, 0.0)
    o_ref[...] = o.astype(o_ref.dtype)
    # TODO(synk): nn.Dropout is stochastic only in training; eval semantics
    #             (identity) are implemented here.


def _as_bias_row(b, n: int, name: str):
    """Accept PyTorch-style (n,) or (1, n) biases; return (1, n) float32."""
    b = jnp.asarray(b)
    if b.ndim == 1:
        b = b[None, :]
    if b.shape != (1, n):
        raise ValueError(f"{name} must have shape ({n},) or (1, {n}); got {b.shape}")
    return b.astype(jnp.float32)


@functools.partial(jax.jit,
                   static_argnames=("block_b", "min_steps", "compute_dtype", "out_dtype"))
def tab_mlp_decoder_forward(x, w1, b1, w2, b2, *, block_b=4096, min_steps=4,
                            compute_dtype=jnp.bfloat16, out_dtype=jnp.bfloat16):
    """TabMlpDecoder forward (eval mode).

    x : (B, h0); w1 : (h0, h1); b1 : (h1,) or (1, h1); w2 : (h1, embed_dim);
    b2 : (embed_dim,) or (1, embed_dim).  Returns (B, embed_dim) in `out_dtype`.

    `block_b` is the max rows per grid step (sweep 4096-8192 on v5e/v6e for
    very large batches); `min_steps` keeps the grid long enough for v7x's two
    TensorCores to share it under dimension_semantics=("parallel",).
    """
    B, d0 = x.shape
    if w1.shape[0] != d0:
        raise ValueError(f"w1 must be (in={d0}, out); got {w1.shape}")
    d1 = w1.shape[1]
    if w2.shape[0] != d1:
        raise ValueError(f"w2 must be (in={d1}, out); got {w2.shape}")
    d2 = w2.shape[1]

    b1f = _as_bias_row(b1, d1, "b1")
    b2f = _as_bias_row(b2, d2, "b2")
    w1c = w1.astype(compute_dtype)
    w2c = w2.astype(compute_dtype)

    # Lane-dense output: pad embed_dim to a multiple of 128 via zero columns in
    # w2/b2 (ReLU(0 + 0) == 0) and slice them off after the call.
    d2p = _round_up(d2, 128)
    if d2p != d2:
        w2c = jnp.pad(w2c, ((0, 0), (0, d2p - d2)))
        b2f = jnp.pad(b2f, ((0, 0), (0, d2p - d2)))

    out_itemsize = jnp.dtype(out_dtype).itemsize

    # --- batch tiling --------------------------------------------------------
    # Cap tile_b so double-buffered x / out tiles plus f32 intermediates fit
    # comfortably in scoped VMEM (Mosaic lane-pads last dims to 128).
    lane = lambda n: _round_up(n, 128)
    bytes_per_row = (2 * lane(d0) * x.dtype.itemsize          # x tile, double-buffered
                     + 2 * lane(d2p) * out_itemsize           # out tile, double-buffered
                     + 4 * (lane(d1) + lane(d2p)))            # f32 intermediates h, o
    max_tile = max(16, (_VMEM_TILE_BUDGET // bytes_per_row) // 16 * 16)
    block_b_eff = max(16, min((block_b // 16) * 16, max_tile))

    # Minimal padding: round B up to the bf16 sublane pack (16) and pick
    # tile_b = round_up(cdiv(B, steps), 16), so padding is a handful of rows
    # instead of up to a whole tile.
    b16 = _round_up(max(B, 16), 16)
    want_steps = max(_cdiv(b16, block_b_eff), min(min_steps, b16 // 16))
    tile_b = _round_up(_cdiv(b16, want_steps), 16)
    n_steps = _cdiv(b16, tile_b)
    b_pad = tile_b * n_steps

    xp = x if b_pad == B else jnp.pad(x, ((0, b_pad - B), (0, 0)))

    cost = pl.CostEstimate(
        flops=2 * b_pad * (d0 * d1 + d1 * d2p),
        transcendentals=0,
        bytes_accessed=(b_pad * d0 * x.dtype.itemsize
                        + b_pad * d2p * out_itemsize
                        + w1c.size * w1c.dtype.itemsize
                        + w2c.size * w2c.dtype.itemsize
                        + b1f.size * 4 + b2f.size * 4),
    )

    out = pl.pallas_call(
        _mlp_decoder_kernel,
        out_shape=jax.ShapeDtypeStruct((b_pad, d2p), out_dtype),
        grid_spec=pltpu.PrefetchScalarGridSpec(
            num_scalar_prefetch=0,
            grid=(n_steps,),
            in_specs=[
                # x tile over batch (caller dtype; cast to bf16 in-kernel).
                pl.BlockSpec((tile_b, d0), lambda i: (i, 0)),
                # Weights / biases: constant block index -> fetched once, resident.
                pl.BlockSpec((d0, d1), lambda i: (0, 0)),
                pl.BlockSpec((1, d1), lambda i: (0, 0)),
                pl.BlockSpec((d1, d2p), lambda i: (0, 0)),
                pl.BlockSpec((1, d2p), lambda i: (0, 0)),
            ],
            out_specs=pl.BlockSpec((tile_b, d2p), lambda i: (i, 0)),
        ),
        compiler_params=pltpu.CompilerParams(
            dimension_semantics=("parallel",),
            vmem_limit_bytes=_VMEM_LIMIT_BYTES,
        ),
        cost_estimate=cost,
    )(xp, w1c, b1f, w2c, b2f)

    if b_pad != B:
        out = out[:B]
    if d2p != d2:
        out = out[:, :d2]
    return out


def init_linear_params(key, fan_in, fan_out, dtype=jnp.float32):
    """nn.Linear-style init: U(-1/sqrt(fan_in), 1/sqrt(fan_in)).

    Weight is returned already transposed to (fan_in, fan_out); bias is (fan_out,)."""
    kw, kb = jax.random.split(key)
    bound = 1.0 / (fan_in ** 0.5)
    w = jax.random.uniform(kw, (fan_in, fan_out), dtype, minval=-bound, maxval=bound)
    b = jax.random.uniform(kb, (fan_out,), dtype, minval=-bound, maxval=bound)
    return w, b


if __name__ == "__main__":
    # Shapes consistent with TabMlpDecoder(embed_dim=128, mlp_hidden_dims=[32, 64]):
    #   d_hidden = [32, 64, 128] -> Linear(32,64)+ReLU, Linear(64,128)+ReLU
    # batch=10 exercises the (tiny) sublane-padding path; biases are passed
    # as 1-D (PyTorch layout) to exercise the wrapper's bias normalization.
    batch = 10
    h0, h1, embed_dim = 32, 64, 128

    key = jax.random.PRNGKey(0)
    kx, k1, k2 = jax.random.split(key, 3)

    x = jax.random.normal(kx, (batch, h0), dtype=jnp.float32)
    w1, b1 = init_linear_params(k1, h0, h1)
    w2, b2 = init_linear_params(k2, h1, embed_dim)

    out = tab_mlp_decoder_forward(x, w1, b1, w2, b2)
    out = jax.block_until_ready(out)

    # Plain-JAX reference mirroring the kernel numerics: bf16 weights / x,
    # f32 accumulation, f32 inter-layer activation (eval-mode dropout = id).
    xb = x.astype(jnp.bfloat16).astype(jnp.float32)
    w1b = w1.astype(jnp.bfloat16).astype(jnp.float32)
    w2b = w2.astype(jnp.bfloat16).astype(jnp.float32)
    h_ref = jnp.maximum(xb @ w1b + b1[None, :], 0.0)
    ref = jnp.maximum(h_ref @ w2b + b2[None, :], 0.0).astype(jnp.bfloat16)

    assert out.shape == (batch, embed_dim), out.shape
    assert out.dtype == jnp.bfloat16, out.dtype
    assert jnp.allclose(out.astype(jnp.float32), ref.astype(jnp.float32),
                        atol=2e-2, rtol=2e-2)

    print("KERNEL_OK")
</pallas_src>

<mosaic_0001>
module attributes {stable_mosaic.version = 11 : i64} {
  func.func @_mlp_decoder_kernel(%arg0: i32, %arg1: memref<16x32xf32, #tpu.memory_space<vmem>>, %arg2: memref<32x64xbf16, #tpu.memory_space<vmem>>, %arg3: memref<1x64xf32, #tpu.memory_space<vmem>>, %arg4: memref<64x128xbf16, #tpu.memory_space<vmem>>, %arg5: memref<1x128xf32, #tpu.memory_space<vmem>>, %arg6: memref<16x128xbf16, #tpu.memory_space<vmem>>) attributes {dimension_semantics = [#tpu.dimension_semantics<parallel>], iteration_bounds = array<i64: 1>, scalar_prefetch = 0 : i64, scratch_operands = 0 : i64, tpu.core_type = #tpu.core_type<tc>, window_params = [{transform_indices = @transform_0, window_bounds = array<i64: 16, 32>}, {pipeline_mode = #tpu.pipeline_mode<synchronous>, transform_indices = @transform_1, window_bounds = array<i64: 32, 64>}, {pipeline_mode = #tpu.pipeline_mode<synchronous>, transform_indices = @transform_2, window_bounds = array<i64: 1, 64>}, {pipeline_mode = #tpu.pipeline_mode<synchronous>, transform_indices = @transform_3, window_bounds = array<i64: 64, 128>}, {pipeline_mode = #tpu.pipeline_mode<synchronous>, transform_indices = @transform_4, window_bounds = array<i64: 1, 128>}, {transform_indices = @transform_5, window_bounds = array<i64: 16, 128>}]} {
    %c0 = arith.constant 0 : index
    %c0_0 = arith.constant 0 : index
    %0 = vector.load %arg1[%c0, %c0_0] : memref<16x32xf32, #tpu.memory_space<vmem>>, vector<16x32xf32>
    %1 = arith.truncf %0 : vector<16x32xf32> to vector<16x32xbf16>
    %c0_1 = arith.constant 0 : index
    %c0_2 = arith.constant 0 : index
    %2 = vector.load %arg2[%c0_1, %c0_2] : memref<32x64xbf16, #tpu.memory_space<vmem>>, vector<32x64xbf16>
    %cst = arith.constant dense<0.000000e+00> : vector<16x64xf32>
    %3 = tpu.matmul %1, %2, %cst {dimension_numbers = #tpu.dot_dimension_numbers<[1], [0], [0], [1], [0, 0, 1, 1], [], []>} : vector<16x32xbf16>, vector<32x64xbf16>, vector<16x64xf32> -> vector<16x64xf32>
    %c0_3 = arith.constant 0 : index
    %c0_4 = arith.constant 0 : index
    %4 = vector.load %arg3[%c0_3, %c0_4] : memref<1x64xf32, #tpu.memory_space<vmem>>, vector<1x64xf32>
    %5 = vector.broadcast %4 : vector<1x64xf32> to vector<16x64xf32>
    %6 = arith.addf %3, %5 : vector<16x64xf32>
    %cst_5 = arith.constant 0.000000e+00 : f32
    %7 = vector.broadcast %cst_5 : f32 to vector<16x64xf32>
    %8 = arith.maximumf %6, %7 : vector<16x64xf32>
    %c0_6 = arith.constant 0 : index
    %c0_7 = arith.constant 0 : index
    %9 = vector.load %arg4[%c0_6, %c0_7] : memref<64x128xbf16, #tpu.memory_space<vmem>>, vector<64x128xbf16>
    %10 = arith.extf %9 : vector<64x128xbf16> to vector<64x128xf32>
    %cst_8 = arith.constant dense<0.000000e+00> : vector<16x128xf32>
    %11 = tpu.matmul %8, %10, %cst_8 {dimension_numbers = #tpu.dot_dimension_numbers<[1], [0], [0], [1], [0, 0, 1, 1], [], []>} : vector<16x64xf32>, vector<64x128xf32>, vector<16x128xf32> -> vector<16x128xf32>
    %c0_9 = arith.constant 0 : index
    %c0_10 = arith.constant 0 : index
    %12 = vector.load %arg5[%c0_9, %c0_10] : memref<1x128xf32, #tpu.memory_space<vmem>>, vector<1x128xf32>
    %13 = vector.broadcast %12 : vector<1x128xf32> to vector<16x128xf32>
    %14 = arith.addf %11, %13 : vector<16x128xf32>
    %cst_11 = arith.constant 0.000000e+00 : f32
    %15 = vector.broadcast %cst_11 : f32 to vector<16x128xf32>
    %16 = arith.maximumf %14, %15 : vector<16x128xf32>
    %17 = arith.truncf %16 : vector<16x128xf32> to vector<16x128xbf16>
    %c0_12 = arith.constant 0 : index
    %c0_13 = arith.constant 0 : index
    %18 = vector.load %arg6[%c0_12, %c0_13] : memref<16x128xbf16, #tpu.memory_space<vmem>>, vector<16x128xbf16>
    tpu.vector_store %arg6[%c0_12, %c0_13], %17 {strides = array<i32>} : memref<16x128xbf16, #tpu.memory_space<vmem>>, vector<16x128xbf16>,
    return
  }
  func.func @transform_0(%arg0: i32) -> (i32, i32) {
    %c0_i32 = arith.constant 0 : i32
    %c0_i32_0 = arith.constant 0 : i32
    return %arg0, %c0_i32 : i32, i32
  }
  func.func @transform_1(%arg0: i32) -> (i32, i32) {
    %c0_i32 = arith.constant 0 : i32
    %c0_i32_0 = arith.constant 0 : i32
    %c0_i32_1 = arith.constant 0 : i32
    return %c0_i32, %c0_i32_0 : i32, i32
  }
  func.func @transform_2(%arg0: i32) -> (i32, i32) {
    %c0_i32 = arith.constant 0 : i32
    %c0_i32_0 = arith.constant 0 : i32
    %c0_i32_1 = arith.constant 0 : i32
    return %c0_i32, %c0_i32_0 : i32, i32
  }
  func.func @transform_3(%arg0: i32) -> (i32, i32) {
    %c0_i32 = arith.constant 0 : i32
    %c0_i32_0 = arith.constant 0 : i32
    %c0_i32_1 = arith.constant 0 : i32
    return %c0_i32, %c0_i32_0 : i32, i32
  }
  func.func @transform_4(%arg0: i32) -> (i32, i32) {
    %c0_i32 = arith.constant 0 : i32
    %c0_i32_0 = arith.constant 0 : i32
    %c0_i32_1 = arith.constant 0 : i32
    return %c0_i32, %c0_i32_0 : i32, i32
  }
  func.func @transform_5(%arg0: i32) -> (i32, i32) {
    %c0_i32 = arith.constant 0 : i32
    %c0_i32_0 = arith.constant 0 : i32
    return %arg0, %c0_i32 : i32, i32
  }
}

</mosaic_0001>

<llo_original>
// kernel: tab_mlp_decoder_forward.1
$region0: #{tab_mlp_decoder_forward.1}
  #allocation0 [shape = 'u32[]', space=smem, size = 0x4, offset = 0x4, fixed_abs, tag = 'smem constant byte address 0x4 - core index']
  #allocation1 [shape = 'u32[144,128]{1,0:T(1,128)}', space=vmem, size = 0x12000, scoped, tag = 'internal scratch']
  %s0 = inlined_call_operand.vmem [shape: f32[16,32], index: 0, kind: input, shape index: {}]
  %s1 = inlined_call_operand.vmem [shape: bf16[32,64], index: 1, kind: input, shape index: {}]
  %s2 = inlined_call_operand.vmem [shape: f32[1,64], index: 2, kind: input, shape index: {}]
  %s3 = inlined_call_operand.vmem [shape: bf16[64,128], index: 3, kind: input, shape index: {}]
  %s4 = inlined_call_operand.vmem [shape: f32[1,128], index: 4, kind: input, shape index: {}]
  %s5 = inlined_call_operand.hbm [shape: bf16[16,128], index: 5, kind: output, shape index: {}]
  %s6 = sld [smem:[#allocation0]]
  $region30: #{tab_mlp_decoder_forward.1} parent=0
    _
  %s8 = ssub.s32 1, %s6
  %s9 = scalar_select 0, %s8, %s6
  $region1: #{tab_mlp_decoder_forward.1} parent=0
    #allocation2 [shape = 'u8[4096]{0}', space=vmem, size = 0x1000, scoped, tag = 'output window, operand 0, single buffered']
    #allocation3 [shape = 's32[1]{0}', space=sflag, size = 0x4, scoped, tag = 'scoped memory for tab_mlp_decoder_forward.1']
    %10 = vsyncpa [#allocation3], 0
    // Predicated region
    $region2: #{tab_mlp_decoder_forward.1} parent=1 // pred_check
      _
    $region3: #{tab_mlp_decoder_forward.1} parent=1 // pred_check_branch
      %12 = sbr.rel (0) target = $region5
    $region4: #{tab_mlp_decoder_forward.1} parent=1 // pred_region
      _
    $region5: #{tab_mlp_decoder_forward.1} parent=1 // pred_fallthru
      _
    // Predicated region
    $region6: #{tab_mlp_decoder_forward.1} parent=1 // pred_check
      _
    $region7: #{tab_mlp_decoder_forward.1} parent=1 // pred_check_branch
      %14 = sbr.rel (0) target = $region9
    $region8: #{tab_mlp_decoder_forward.1} parent=1 // pred_region
      _
    $region9: #{tab_mlp_decoder_forward.1} parent=1 // pred_fallthru
      _
    // Predicated region
    $region10: #{tab_mlp_decoder_forward.1} parent=1 // pred_check
      _
    $region11: #{tab_mlp_decoder_forward.1} parent=1 // pred_check_branch
      %16 = sbr.rel (0) target = $region13
    $region12: #{tab_mlp_decoder_forward.1} parent=1 // pred_region
      _
    $region13: #{tab_mlp_decoder_forward.1} parent=1 // pred_fallthru
      _
    // Predicated region
    $region14: #{tab_mlp_decoder_forward.1} parent=1 // pred_check
      _
    $region15: #{tab_mlp_decoder_forward.1} parent=1 // pred_check_branch
      %18 = sbr.rel (0) target = $region17
    $region16: #{tab_mlp_decoder_forward.1} parent=1 // pred_region
      _
    $region17: #{tab_mlp_decoder_forward.1} parent=1 // pred_fallthru
      _
    // Predicated region
    $region18: #{tab_mlp_decoder_forward.1} parent=1 // pred_check
      _
    $region19: #{tab_mlp_decoder_forward.1} parent=1 // pred_check_branch
      %20 = sbr.rel (0) target = $region21
    $region20: #{tab_mlp_decoder_forward.1} parent=1 // pred_region
      _
    $region21: #{tab_mlp_decoder_forward.1} parent=1 // pred_fallthru
      _
    %v22 = vld [vmem:[%s0] sm:$0xff]
    %v23 = vld [vmem:[%s0 + $0x8] sm:$0xff]
    %v24 = vpack.c.bf16 %v23, %v22
    %v25 = vld [vmem:[%s1] sm:$0xf]
    %v26 = vld [vmem:[%s1 + $0x4] sm:$0xf]
    %v27 = vld [vmem:[%s1 + $0x8] sm:$0xf]
    %v28 = vld [vmem:[%s1 + $0xc] sm:$0xf]
    %v29 = vld [vmem:[%s2] sm:$0x1]
    %v31 = vlaneseq
    %v32 = vshrl.u32 %v31, 7
    %v33 = vsub.s32 0, %v32
    %v34 = vrot.slane %v29, %v33
    %v40 = vunpack.c.l.b16 %v25
    %v41 = vunpack.c.l.b16 %v26
    %v42 = vunpack.c.l.b16 %v27
    %v43 = vunpack.c.l.b16 %v28
    %v44 = vpack.c.b16 %v41, %v40
    %v45 = vpack.c.b16 %v43, %v42
    %vm48 = vcmask 261120
    %v50 = vsel %vm48, %v24, 0
    %52 = vmatprep.subr.bf16.mxu0 0
    %53 = vmatpush1.bf16.msra.mxu0 0
    %54 = vmatprep.subr.bf16.mxu0 0
    %55 = vmatpush1.bf16.msra.mxu0 0
    %56 = vmatprep.subr.bf16.mxu0 0
    %57 = vmatpush1.bf16.msra.mxu0 0
    %58 = vmatprep.subr.bf16.mxu0 0
    %59 = vmatpush1.bf16.msra.mxu0 0
    %60 = vmatprep.subr.bf16.mxu0 0
    %61 = vmatpush1.bf16.msra.mxu0 0
    %62 = vmatprep.subr.bf16.mxu0 0
    %63 = vmatpush1.bf16.msra.mxu0 0
    %64 = vmatprep.subr.bf16.mxu0 0
    %65 = vmatpush1.bf16.msra.mxu0 %v45
    %66 = vmatprep.subr.bf16.mxu0 0
    %67 = vmatpush1.bf16.msra.mxu0 %v44
    %68 = vmatprep.subr.bf16.mxu0 0
    %69 = vmatpush2.bf16.msra.mxu0 0
    %70 = vmatprep.subr.bf16.mxu0 0
    %71 = vmatpush2.bf16.msra.mxu0 0
    %72 = vmatprep.subr.bf16.mxu0 0
    %73 = vmatpush2.bf16.msra.mxu0 0
    %74 = vmatprep.subr.bf16.mxu0 0
    %75 = vmatpush2.bf16.msra.mxu0 0
    %76 = vmatprep.subr.bf16.mxu0 0
    %77 = vmatpush2.bf16.msra.mxu0 0
    %78 = vmatprep.subr.bf16.mxu0 0
    %79 = vmatpush2.bf16.msra.mxu0 0
    %80 = vmatprep.subr.bf16.mxu0 0
    %81 = vmatpush2.bf16.msra.mxu0 0
    %82 = vmatprep.subr.bf16.mxu0 0
    %83 = vmatpush2.bf16.msra.mxu0 0
    %84 = vmatprep.mubr.bf16.mxu0 0
    %85 = vmatmul.mubr.bf16.gmra.mxu0 %v50
    %v86 = vpop.f32.mrf.mxu0
    %v87 = vadd.f32 %v34, %v86
    %v88 = vpop.f32.mrf.mxu0
    %v89 = vpop.f32.mrf.mxu0
    %v90 = vadd.f32 %v34, %v89
    %v91 = vpop.f32.mrf.mxu0
    %92 = vdwg.mxu0
    %v93 = vmax.f32 %v87, 0.0
    %v94 = vmax.f32 %v90, 0.0
    %v95 = vld [vmem:[%s3] sm:$0xf]
    %v96 = vld [vmem:[%s3 + $0x4] sm:$0xf]
    %v97 = vld [vmem:[%s3 + $0x8] sm:$0xf]
    %v98 = vld [vmem:[%s3 + $0xc] sm:$0xf]
    %v99 = vld [vmem:[%s3 + $0x10] sm:$0xf]
    %v100 = vld [vmem:[%s3 + $0x14] sm:$0xf]
    %v101 = vld [vmem:[%s3 + $0x18] sm:$0xf]
    %v102 = vld [vmem:[%s3 + $0x1c] sm:$0xf]
    %v103 = vunpack.c.l.bf16 %v95
    %v104 = vunpack.c.l.bf16 %v96
    %v105 = vunpack.c.l.bf16 %v97
    %v106 = vunpack.c.l.bf16 %v98
    %v107 = vunpack.c.l.bf16 %v99
    %v108 = vunpack.c.l.bf16 %v100
    %v109 = vunpack.c.l.bf16 %v101
    %v110 = vunpack.c.l.bf16 %v102
    %v111 = vld [vmem:[%s4] sm:$0x1]
    %v113 = vlaneseq
    %v114 = vshrl.u32 %v113, 7
    %v115 = vsub.s32 0, %v114
    %v116 = vrot.slane %v111, %v115
    %vm118 = vcmask 523264
    %v120 = vsel %vm118, %v93, 0
    %v123 = vsel %vm118, %v94, 0
    %125 = vmatprep.subr.mxu0 0.0
    %126 = vmatpush1.msra.mxu0 0.0
    %127 = vmatprep.subr.mxu0 0.0
    %128 = vmatpush1.msra.mxu0 0.0
    %129 = vmatprep.subr.mxu0 0.0
    %130 = vmatpush1.msra.mxu0 0.0
    %131 = vmatprep.subr.mxu0 0.0
    %132 = vmatpush1.msra.mxu0 0.0
    %133 = vmatprep.subr.mxu0 0.0
    %134 = vmatpush1.msra.mxu0 0.0
    %135 = vmatprep.subr.mxu0 0.0
    %136 = vmatpush1.msra.mxu0 0.0
    %137 = vmatprep.subr.mxu0 0.0
    %138 = vmatpush1.msra.mxu0 0.0
    %139 = vmatprep.subr.mxu0 0.0
    %140 = vmatpush1.msra.mxu0 0.0
    %141 = vmatprep.subr.mxu0 0.0
    %142 = vmatpush1.msra.mxu0 %v110
    %143 = vmatprep.subr.mxu0 0.0
    %144 = vmatpush1.msra.mxu0 %v109
    %145 = vmatprep.subr.mxu0 0.0
    %146 = vmatpush1.msra.mxu0 %v108
    %147 = vmatprep.subr.mxu0 0.0
    %148 = vmatpush1.msra.mxu0 %v107
    %149 = vmatprep.subr.mxu0 0.0
    %150 = vmatpush1.msra.mxu0 %v106
    %151 = vmatprep.subr.mxu0 0.0
    %152 = vmatpush1.msra.mxu0 %v105
    %153 = vmatprep.subr.mxu0 0.0
    %154 = vmatpush1.msra.mxu0 %v104
    %155 = vmatprep.subr.mxu0 0.0
    %156 = vmatpush1.msra.mxu0 %v103
    %157 = vmatprep.subr.mxu0 0.0
    %158 = vmatpush2.msra.mxu0 0.0
    %159 = vmatprep.subr.mxu0 0.0
    %160 = vmatpush2.msra.mxu0 0.0
    %161 = vmatprep.subr.mxu0 0.0
    %162 = vmatpush2.msra.mxu0 0.0
    %163 = vmatprep.subr.mxu0 0.0
    %164 = vmatpush2.msra.mxu0 0.0
    %165 = vmatprep.subr.mxu0 0.0
    %166 = vmatpush2.msra.mxu0 0.0
    %167 = vmatprep.subr.mxu0 0.0
    %168 = vmatpush2.msra.mxu0 0.0
    %169 = vmatprep.subr.mxu0 0.0
    %170 = vmatpush2.msra.mxu0 0.0
    %171 = vmatprep.subr.mxu0 0.0
    %172 = vmatpush2.msra.mxu0 0.0
    %173 = vmatprep.subr.mxu0 0.0
    %174 = vmatpush2.msra.mxu0 0.0
    %175 = vmatprep.subr.mxu0 0.0
    %176 = vmatpush2.msra.mxu0 0.0
    %177 = vmatprep.subr.mxu0 0.0
    %178 = vmatpush2.msra.mxu0 0.0
    %179 = vmatprep.subr.mxu0 0.0
    %180 = vmatpush2.msra.mxu0 0.0
    %181 = vmatprep.subr.mxu0 0.0
    %182 = vmatpush2.msra.mxu0 0.0
    %183 = vmatprep.subr.mxu0 0.0
    %184 = vmatpush2.msra.mxu0 0.0
    %185 = vmatprep.subr.mxu0 0.0
    %186 = vmatpush2.msra.mxu0 0.0
    %187 = vmatprep.subr.mxu0 0.0
    %188 = vmatpush2.msra.mxu0 0.0
    %189 = vmatprep.mubr.f32.mxu0 0.0
    %190 = vmatmul.mubr.f32.gmra.mxu0 %v120
    %v191 = vpop.f32.mrf.mxu0
    %v192 = vadd.f32 %v116, %v191
    %v193 = vpop.f32.mrf.mxu0
    %194 = vmatprep.mubr.f32.mxu0 0.0
    %195 = vmatmul.mubr.f32.gmra.mxu0 %v123
    %v196 = vpop.f32.mrf.mxu0
    %v197 = vadd.f32 %v116, %v196
    %v198 = vpop.f32.mrf.mxu0
    %199 = vdwg.mxu0
    %v200 = vmax.f32 %v192, 0.0
    %v201 = vmax.f32 %v197, 0.0
    %v202 = vpack.c.bf16 %v201, %v200
    %v204 = vunpack.c.l.b16 %v202
    %v205 = vunpack.c.h.b16 %v202
    %v206 = vpack.c.b16 %v204, %v204
    %v207 = vpack.c.b16 %v205, %v205
    %210 = vst [vmem:[#allocation2] sm:$0xf] %v206
    %211 = vst [vmem:[#allocation2 + $0x4] sm:$0xf] %v207
    // Predicated region
    $region22: #{tab_mlp_decoder_forward.1} parent=1 // pred_check
      _
    $region23: #{tab_mlp_decoder_forward.1} parent=1 // pred_check_branch
      %213 = sbr.rel (0) target = $region25
    $region24: #{tab_mlp_decoder_forward.1} parent=1 // pred_region
      %s215 = ssub.s32 128, 128
      %216 = vsyncadd [#allocation3], %s215
      %s217 = sshll.u32 [#allocation2], 4
      %s218 = int_to_ptr.vmem [resolvable:$true] %s217
      %223 = dma.vmem_to_hbm [thread:$0]  %s218, 128, %s5, [#allocation3], 64, 64, 4
    $region25: #{tab_mlp_decoder_forward.1} parent=1 // pred_fallthru
      _
    // Predicated region
    $region26: #{tab_mlp_decoder_forward.1} parent=1 // pred_check
      _
    $region27: #{tab_mlp_decoder_forward.1} parent=1 // pred_check_branch
      %225 = sbr.rel (0) target = $region29
    $region28: #{tab_mlp_decoder_forward.1} parent=1 // pred_region
      %226 = dma.done [#allocation3], 128
    $region29: #{tab_mlp_decoder_forward.1} parent=1 // pred_fallthru
      _
    %227 = vsyncpa [#allocation3], 1

</llo_original>
